<compile_context>
chip_gen: v5e
topology: v5e:2x2
jax: 0.10.0
libtpu: 0.0.40
codegen_flags: <defaults>
</compile_context>

<pallas_src>
import jax
import jax.numpy as jnp
from jax import lax
from jax.experimental import pallas as pl
from jax.experimental.pallas import tpu as pltpu

LANES = 128
SUBLANES = 8
CHUNK_ROWS = 512            # inner compute tile: (512, 128) f32 = 256 KiB
MAX_BLOCK_ROWS = 8192       # per-grid-step DMA block: (8192, 128) f32 = 4 MiB / input
VMEM_LIMIT_BYTES = 32 * 1024 * 1024


def _cdiv(a, b):
    return -(-a // b)


def _round_up(a, b):
    return _cdiv(a, b) * b


def _tensorcores_per_chip():
    """2 on dual-TensorCore generations (v4 megacore, v5p, v7x); 1 otherwise."""
    try:
        kind = jax.devices()[0].device_kind.lower()
    except Exception:
        return 1
    if any(tag in kind for tag in ("v4", "v5p", "v7", "tpu7", "7x")):
        return 2
    return 1


def _stable_bce(x, y):
    # Numerically stable BCE-with-logits (matches torch):
    #   loss = max(x, 0) - x*y + log1p(exp(-|x|))
    return jnp.maximum(x, 0.0) - x * y + jnp.log1p(jnp.exp(-jnp.abs(x)))


def _make_bce_kernel(block_rows, steps_per_core, valid_rows, needs_mask):
    """Kernel over a (block_rows, 128) tile folding into a resident (8,128) acc."""
    n_chunks = _cdiv(block_rows, CHUNK_ROWS)
    chunk = block_rows if n_chunks == 1 else CHUNK_ROWS
    assert block_rows == n_chunks * chunk and chunk % SUBLANES == 0

    def kernel(x_ref, y_ref, o_ref):
        c = pl.program_id(0)
        i = pl.program_id(1)

        @pl.when(i == 0)
        def _():
            o_ref[...] = jnp.zeros_like(o_ref)

        # UNclamped global row base of this grid step (used only for masking).
        base_row = (c * steps_per_core + i) * block_rows
        if needs_mask:
            row_iota = lax.broadcasted_iota(jnp.int32, (chunk, LANES), 0)

        def chunk_sum(k):
            if n_chunks == 1:
                r0 = 0
            else:
                r0 = pl.multiple_of(k * chunk, chunk)
            x = x_ref[pl.ds(r0, chunk), :].astype(jnp.float32)
            y = y_ref[pl.ds(r0, chunk), :].astype(jnp.float32)
            loss = _stable_bce(x, y)
            if needs_mask:
                rows_g = base_row + r0 + row_iota
                loss = jnp.where(rows_g < valid_rows, loss, 0.0)
            # (chunk,128) -> (8,128): sublane-aligned fold, elementwise vreg adds only.
            return jnp.sum(loss.reshape(-1, SUBLANES, LANES), axis=0)

        if n_chunks == 1:
            o_ref[...] += chunk_sum(0)
        else:
            acc = lax.fori_loop(
                0, n_chunks,
                lambda k, a: a + chunk_sum(k),
                jnp.zeros((SUBLANES, LANES), jnp.float32),
            )
            o_ref[...] += acc

    return kernel


def _bce_mean_impl(logits, labels):
    assert logits.shape == labels.shape
    n_elem = int(logits.size)
    if n_elem == 0:
        return jnp.float32(0.0)

    x = logits.reshape(-1)
    y = labels.reshape(-1)

    rows = n_elem // LANES
    rem = n_elem - rows * LANES

    total = jnp.float32(0.0)

    if rows > 0:
        n_main = rows * LANES
        x2 = lax.slice(x, (0,), (n_main,)).reshape(rows, LANES)
        y2 = lax.slice(y, (0,), (n_main,)).reshape(rows, LANES)

        rows8 = _round_up(rows, SUBLANES)
        if rows8 <= CHUNK_ROWS:
            block_rows = rows8
        else:
            block_rows = min(MAX_BLOCK_ROWS, _round_up(rows8, CHUNK_ROWS))

        total_blocks = _cdiv(rows, block_rows)
        ncores = max(1, min(_tensorcores_per_chip(), total_blocks))
        steps_per_core = _cdiv(total_blocks, ncores)
        # Does the (ncores * steps * block_rows) grid coverage overshoot `rows`?
        needs_mask = (ncores * steps_per_core * block_rows) != rows
        last_block = total_blocks - 1

        if ncores * steps_per_core == total_blocks:
            def in_idx(c, i):
                return (c * steps_per_core + i, 0)
        else:
            # Clamp fully-out-of-range steps to the last block (their rows are
            # masked to zero in-kernel via the UNclamped row index), keeping
            # every DMA in bounds.
            def in_idx(c, i):
                return (jnp.minimum(c * steps_per_core + i, last_block), 0)

        kernel = _make_bce_kernel(block_rows, steps_per_core, rows, needs_mask)

        partial_sums = pl.pallas_call(
            kernel,
            out_shape=jax.ShapeDtypeStruct((ncores * SUBLANES, LANES), jnp.float32),
            grid=(ncores, steps_per_core),
            in_specs=[
                pl.BlockSpec((block_rows, LANES), in_idx),
                pl.BlockSpec((block_rows, LANES), in_idx),
            ],
            out_specs=pl.BlockSpec((SUBLANES, LANES), lambda c, i: (c, 0)),
            compiler_params=pltpu.CompilerParams(
                dimension_semantics=("parallel", "arbitrary"),
                vmem_limit_bytes=VMEM_LIMIT_BYTES,
            ),
        )(x2, y2)

        total = total + jnp.sum(partial_sums)

    if rem > 0:
        # Sub-128-element remainder: tiny, done in plain JAX (no padding pass).
        xt = lax.slice(x, (rows * LANES,), (n_elem,)).astype(jnp.float32)
        yt = lax.slice(y, (rows * LANES,), (n_elem,)).astype(jnp.float32)
        total = total + jnp.sum(_stable_bce(xt, yt))

    return total / jnp.float32(n_elem)


# jit so flatten/slice/partial-sum/division fuse into minimal passes + one dispatch.
bce_with_logits = jax.jit(_bce_mean_impl)


class BCE:
    """JAX/Pallas port of the PyTorch BCE module (no parameters)."""

    def end_of_epoch(self):
        pass

    def __call__(self, logits, labels, index=None):
        # `index` is unused in the reference forward.
        return bce_with_logits(logits, labels)


if __name__ == "__main__":
    key = jax.random.PRNGKey(0)
    k1, k2 = jax.random.split(key)

    # Small NCHW-shaped inputs consistent with a segmentation-style BCE loss.
    B, C, H, W = 2, 4, 16, 16
    logits = jax.random.normal(k1, (B, C, H, W), dtype=jnp.float32)
    labels = (jax.random.uniform(k2, (B, C, H, W)) > 0.5).astype(jnp.float32)
    index = jnp.arange(B, dtype=jnp.int32)  # unused, mirrors forward signature

    loss_mod = BCE()
    loss = loss_mod(logits, labels, index)
    loss = jax.block_until_ready(loss)

    # Reference check in plain JAX (stable formulation, mean reduction).
    ref = jnp.mean(_stable_bce(logits, labels))
    assert jnp.allclose(loss, ref, rtol=1e-5, atol=1e-6), (loss, ref)

    # Also exercise a non-aligned size (tail masking + remainder path).
    n2 = 1000 * 128 + 37
    xs = jax.random.normal(k1, (n2,), dtype=jnp.float32)
    ys = (jax.random.uniform(k2, (n2,)) > 0.5).astype(jnp.float32)
    loss2 = jax.block_until_ready(bce_with_logits(xs, ys))
    ref2 = jnp.mean(_stable_bce(xs, ys))
    assert jnp.allclose(loss2, ref2, rtol=1e-5, atol=1e-6), (loss2, ref2)

    print("KERNEL_OK")
</pallas_src>

<mosaic_0001>
module attributes {stable_mosaic.version = 11 : i64} {
  func.func @kernel(%arg0: i32, %arg1: i32, %arg2: memref<16x128xf32, #tpu.memory_space<vmem>>, %arg3: memref<16x128xf32, #tpu.memory_space<vmem>>, %arg4: memref<8x128xf32, #tpu.memory_space<vmem>>) attributes {dimension_semantics = [#tpu.dimension_semantics<parallel>, #tpu.dimension_semantics<arbitrary>], iteration_bounds = array<i64: 1, 1>, scalar_prefetch = 0 : i64, scratch_operands = 0 : i64, tpu.core_type = #tpu.core_type<tc>, window_params = [{transform_indices = @transform_0, window_bounds = array<i64: 16, 128>}, {transform_indices = @transform_1, window_bounds = array<i64: 16, 128>}, {transform_indices = @transform_2, window_bounds = array<i64: 8, 128>}]} {
    %c0_i32 = arith.constant 0 : i32
    %0 = arith.cmpi eq, %arg1, %c0_i32 : i32
    %1 = arith.extui %0 : i1 to i32
    %c0_i32_0 = arith.constant 0 : i32
    %2 = arith.cmpi ne, %1, %c0_i32_0 : i32
    scf.if %2 {
      %cst_10 = arith.constant 0.000000e+00 : f32
      %20 = vector.broadcast %cst_10 : f32 to vector<8x128xf32>
      %c0_11 = arith.constant 0 : index
      %c0_12 = arith.constant 0 : index
      %21 = vector.load %arg4[%c0_11, %c0_12] : memref<8x128xf32, #tpu.memory_space<vmem>>, vector<8x128xf32>
      tpu.vector_store %arg4[%c0_11, %c0_12], %20 {strides = array<i32>} : memref<8x128xf32, #tpu.memory_space<vmem>>, vector<8x128xf32>,
    } else {
    }
    %c0 = arith.constant 0 : index
    %c0_1 = arith.constant 0 : index
    %3 = vector.load %arg4[%c0, %c0_1] : memref<8x128xf32, #tpu.memory_space<vmem>>, vector<8x128xf32>
    %c0_2 = arith.constant 0 : index
    %c0_3 = arith.constant 0 : index
    %4 = vector.load %arg2[%c0_2, %c0_3] : memref<16x128xf32, #tpu.memory_space<vmem>>, vector<16x128xf32>
    %c0_4 = arith.constant 0 : index
    %c0_5 = arith.constant 0 : index
    %5 = vector.load %arg3[%c0_4, %c0_5] : memref<16x128xf32, #tpu.memory_space<vmem>>, vector<16x128xf32>
    %cst = arith.constant 0.000000e+00 : f32
    %6 = vector.broadcast %cst : f32 to vector<16x128xf32>
    %7 = arith.maximumf %4, %6 : vector<16x128xf32>
    %8 = arith.mulf %4, %5 : vector<16x128xf32>
    %9 = arith.subf %7, %8 : vector<16x128xf32>
    %10 = math.absf %4 : vector<16x128xf32>
    %cst_6 = arith.constant 0.000000e+00 : f32
    %11 = vector.broadcast %cst_6 : f32 to vector<16x128xf32>
    %12 = arith.subf %11, %10 : vector<16x128xf32>
    %13 = math.exp %12 : vector<16x128xf32>
    %14 = math.log1p %13 : vector<16x128xf32>
    %15 = arith.addf %9, %14 : vector<16x128xf32>
    %16 = vector.shape_cast %15 : vector<16x128xf32> to vector<2x8x128xf32>
    %cst_7 = arith.constant dense<0.000000e+00> : vector<8x128xf32>
    %17 = vector.multi_reduction <add>, %16, %cst_7 [0] : vector<2x8x128xf32> to vector<8x128xf32>
    %18 = arith.addf %3, %17 : vector<8x128xf32>
    %c0_8 = arith.constant 0 : index
    %c0_9 = arith.constant 0 : index
    %19 = vector.load %arg4[%c0_8, %c0_9] : memref<8x128xf32, #tpu.memory_space<vmem>>, vector<8x128xf32>
    tpu.vector_store %arg4[%c0_8, %c0_9], %18 {strides = array<i32>} : memref<8x128xf32, #tpu.memory_space<vmem>>, vector<8x128xf32>,
    return
  }
  func.func @transform_0(%arg0: i32, %arg1: i32) -> (i32, i32) {
    %c1_i32 = arith.constant 1 : i32
    %0 = arith.muli %arg0, %c1_i32 : i32
    %1 = arith.addi %0, %arg1 : i32
    %c0_i32 = arith.constant 0 : i32
    %c0_i32_0 = arith.constant 0 : i32
    return %1, %c0_i32 : i32, i32
  }
  func.func @transform_1(%arg0: i32, %arg1: i32) -> (i32, i32) {
    %c1_i32 = arith.constant 1 : i32
    %0 = arith.muli %arg0, %c1_i32 : i32
    %1 = arith.addi %0, %arg1 : i32
    %c0_i32 = arith.constant 0 : i32
    %c0_i32_0 = arith.constant 0 : i32
    return %1, %c0_i32 : i32, i32
  }
  func.func @transform_2(%arg0: i32, %arg1: i32) -> (i32, i32) {
    %c0_i32 = arith.constant 0 : i32
    %c0_i32_0 = arith.constant 0 : i32
    return %arg0, %c0_i32 : i32, i32
  }
}

</mosaic_0001>

<llo_original>
// kernel: _bce_mean_impl.1
$region0: #{_bce_mean_impl.1}
  #allocation0 [shape = 'u32[]', space=smem, size = 0x4, offset = 0x4, fixed_abs, tag = 'smem constant byte address 0x4 - core index']
  #allocation1 [shape = 'u32[72,128]{1,0:T(1,128)}', space=vmem, size = 0x9000, scoped, tag = 'internal scratch']
  %s0 = inlined_call_operand.vmem [shape: f32[16,128], index: 0, kind: input, shape index: {}]
  %s1 = inlined_call_operand.vmem [shape: f32[16,128], index: 1, kind: input, shape index: {}]
  %s2 = inlined_call_operand.vmem [shape: f32[8,128], index: 2, kind: output, shape index: {}]
  %s3 = sld [smem:[#allocation0]]
  $region22: #{_bce_mean_impl.1} parent=0
    _
  %s5 = ssub.s32 1, %s3
  %s6 = scalar_select 0, %s5, %s3
  // Predicated region
  $region2: #{_bce_mean_impl.1} parent=0 // pred_check
    _
  $region3: #{_bce_mean_impl.1} parent=0 // pred_check_branch
    %8 = sbr.rel (0) target = $region5
  $region4: #{_bce_mean_impl.1} parent=0 // pred_region
    %s9 = sadd.s32 0, 0
    %s10 = smul.u32 2, %s9
    %p11 = scmp.lt.s32.totalorder %s10, 1
    %s12 = scalar_select %p11, %s10, 1
    %s13 = smul.addr %s12, 8
    %s14 = scalar_lea.vmem %s0, %s13
    %s15 = sadd.s32 0, 0
    %s16 = smul.u32 2, %s15
  $region5: #{_bce_mean_impl.1} parent=0 // pred_fallthru
    _
  // Predicated region
  $region6: #{_bce_mean_impl.1} parent=0 // pred_check
    _
  $region7: #{_bce_mean_impl.1} parent=0 // pred_check_branch
    %18 = sbr.rel (0) target = $region9
  $region8: #{_bce_mean_impl.1} parent=0 // pred_region
    %s19 = sadd.s32 0, 0
    %s20 = smul.u32 2, %s19
    %p21 = scmp.lt.s32.totalorder %s20, 1
    %s22 = scalar_select %p21, %s20, 1
    %s23 = smul.addr %s22, 8
    %s24 = scalar_lea.vmem %s1, %s23
    %s25 = sadd.s32 0, 0
    %s26 = smul.u32 2, %s25
  $region9: #{_bce_mean_impl.1} parent=0 // pred_fallthru
    _
  %s27 = sadd.s32 0, 0
  %s28 = smul.u32 2, %s27
  %p29 = scmp.lt.s32.totalorder %s28, 1
  %s30 = scalar_select %p29, %s28, 1
  %s31 = smul.addr %s30, 8
  %s32 = scalar_lea.vmem %s0, %s31
  %s33 = sadd.s32 0, 0
  %s34 = smul.u32 2, %s33
  %p35 = scmp.lt.s32.totalorder %s34, 1
  %s36 = scalar_select %p35, %s34, 1
  %s37 = smul.addr %s36, 8
  %s38 = scalar_lea.vmem %s1, %s37
  %s39 = sadd.s32 0, 0
  %s40 = smul.u32 2, %s39
  %p41 = scmp.lt.s32.totalorder %s40, 1
  %s42 = scalar_select %p41, %s40, 1
  %s43 = smul.addr %s42, 8
  %s44 = scalar_lea.vmem %s0, %s43
  %s45 = sadd.s32 0, 0
  %s46 = smul.u32 2, %s45
  %s47 = sadd.s32 0, 0
  %s48 = smul.u32 2, %s47
  %p49 = scmp.lt.s32.totalorder %s48, 1
  %s50 = scalar_select %p49, %s48, 1
  %s51 = smul.addr %s50, 8
  %s52 = scalar_lea.vmem %s1, %s51
  %s53 = sadd.s32 0, 0
  %s54 = smul.u32 2, %s53
  %p55 = scmp.eq.s32.totalorder 0, 0
  // Predicated region
  $region10: #{_bce_mean_impl.1} parent=0 // pred_check
    %p56 = pneg %p55
  $region11: #{_bce_mean_impl.1} parent=0 // pred_check_branch
    %58 = sbr.rel (%p56) target = $region13
  $region12: #{_bce_mean_impl.1} parent=0 // pred_region
    %59 = vst [vmem:[%s2] sm:$0xff] 0.0
  $region13: #{_bce_mean_impl.1} parent=0 // pred_fallthru
    _
  %v60 = vld [vmem:[%s2] sm:$0xff]
  %v61 = vld [vmem:[%s44] sm:$0xff]
  %v62 = vld [vmem:[%s44 + $0x8] sm:$0xff]
  %v63 = vld [vmem:[%s52] sm:$0xff]
  %v64 = vld [vmem:[%s52 + $0x8] sm:$0xff]
  %v65 = vmax.f32 %v61, 0.0
  %v66 = vmax.f32 %v62, 0.0
  %v67 = vmul.f32 %v61, %v63
  %v68 = vmul.f32 %v62, %v64
  %v69 = vsub.f32 %v65, %v67
  %v70 = vsub.f32 %v66, %v68
  %v71 = vand.u32 2147483647, %v61
  %v72 = vand.u32 2147483647, %v62
  %v73 = vsub.f32 0.0, %v71
  %v74 = vsub.f32 0.0, %v72
  %v75 = vmul.f32 %v73, 1.442695
  %v76 = vpow.pop %v75
  %v77 = vmul.f32 %v74, 1.442695
  %v78 = vpow.pop %v77
  %v79 = vadd.f32 %v76, 1.0
  %v80 = vlog2.pop %v79
  %v81 = vmul.f32 %v80, 0.6931472
  %v82 = vmul.f32 -0.5, %v76
  %v83 = vadd.f32 %v82, 1.0
  %v84 = vmul.f32 %v83, %v76
  %v85 = vand.u32 2147483647, %v76
  %vm86 = vcmp.lt.f32.partialorder %v85, 0.0004427343
  %v87 = vsel %vm86, %v84, %v81
  %v88 = vadd.f32 %v78, 1.0
  %v89 = vlog2.pop %v88
  %v90 = vmul.f32 %v89, 0.6931472
  %v91 = vmul.f32 -0.5, %v78
  %v92 = vadd.f32 %v91, 1.0
  %v93 = vmul.f32 %v92, %v78
  %v94 = vand.u32 2147483647, %v78
  %vm95 = vcmp.lt.f32.partialorder %v94, 0.0004427343
  %v96 = vsel %vm95, %v93, %v90
  %v97 = vadd.f32 %v69, %v87
  %v98 = vadd.f32 %v70, %v96
  %v99 = vadd.f32 %v97, %v98
  %v100 = vadd.f32 %v60, %v99
  %101 = vst [vmem:[%s2] sm:$0xff] %v100
  // Predicated region
  $region14: #{_bce_mean_impl.1} parent=0 // pred_check
    _
  $region15: #{_bce_mean_impl.1} parent=0 // pred_check_branch
    %103 = sbr.rel (0) target = $region17
  $region16: #{_bce_mean_impl.1} parent=0 // pred_region
    _
  $region17: #{_bce_mean_impl.1} parent=0 // pred_fallthru
    _
  // Predicated region
  $region18: #{_bce_mean_impl.1} parent=0 // pred_check
    _
  $region19: #{_bce_mean_impl.1} parent=0 // pred_check_branch
    %105 = sbr.rel (0) target = $region21
  $region20: #{_bce_mean_impl.1} parent=0 // pred_region
    _
  $region21: #{_bce_mean_impl.1} parent=0 // pred_fallthru
    _

</llo_original>
